<compile_context>
chip_gen: v5e
topology: v5e:2x2
jax: 0.10.0
libtpu: 0.0.40
codegen_flags: <defaults>
</compile_context>

<pallas_src>
import functools

import jax
import jax.numpy as jnp
from jax.experimental import pallas as pl
from jax.experimental.pallas import tpu as pltpu


# --------------------------- tuning knobs ------------------------------------
_MAX_TILE_BYTES = 2 * 1024 * 1024      # per-array x/out tile budget; ~85% of HBM
                                       # roofline and safe under v5e's 16 MiB
                                       # default scoped VMEM even double-buffered.
_MIN_GRID_STEPS = 8                    # >=4 pipelined steps per TC on v7x's 2 cores.
_RESIDENT_MAX_ROWS = 4096              # keep (rows,1) scale/bias VMEM-resident up to
                                       # this many rows (lane-padded ~512 B/row).
_VMEM_LIMIT_BYTES = 32 * 1024 * 1024   # explicit scoped-VMEM limit: >= every default,
                                       # below v7x's 64 MiB physical VMEM.


def _sublane_multiple(dtype) -> int:
    # Packed sublane multiple: 8 (f32), 16 (bf16/f16), 32 (int8/fp8).
    return max(8, 32 // jnp.dtype(dtype).itemsize)


def _choose_row_block(rows: int, cols: int, dtype) -> int:
    """Row-block size: large lane-dense tiles, legal alignment, >= _MIN_GRID_STEPS."""
    itemsize = jnp.dtype(dtype).itemsize
    sub = _sublane_multiple(dtype)

    rows_fit = max(1, _MAX_TILE_BYTES // max(1, cols * itemsize))
    blk = min(rows, rows_fit)
    if blk < sub:
        # Too few rows to tile legally (or cols enormous): one full-extent block.
        return rows
    blk = (blk // sub) * sub

    # Minimum-step rule: shrink the block so the grid has >= _MIN_GRID_STEPS steps,
    # as long as blocks stay at least one sublane multiple tall.
    target = pl.cdiv(rows, _MIN_GRID_STEPS)
    if blk > target:
        blk = max(sub, pl.cdiv(target, sub) * sub)
    return blk


def _scale_bias_kernel(x_ref, scale_ref, bias_ref, o_ref, *,
                       row_block, sublane, resident):
    # x_ref/o_ref: (row_block, cols) VMEM tile.
    # scale_ref/bias_ref: resident (rows_padded, 1) column, or streamed (row_block, 1).
    x = x_ref[...].astype(jnp.float32)
    if resident:
        start = pl.multiple_of(pl.program_id(0) * row_block, sublane)
        s = scale_ref[pl.ds(start, row_block), :]
        b = bias_ref[pl.ds(start, row_block), :]
    else:
        s = scale_ref[...]
        b = bias_ref[...]
    o_ref[...] = (x * s + b).astype(o_ref.dtype)


@jax.jit
def custom_arithmetic_block(x, scale, bias):
    """Pallas TPU equivalent of CustomArithmeticBlock.forward: x * scale + bias.

    x: (N, C, H, W); scale, bias: (1, C, 1, 1) per-channel affine parameters.
    """
    N, C, H, W = x.shape
    rows, cols = N * C, H * W

    # Lane-dense 2D view: last axis (H*W) maps onto the 128-lane dimension.
    # TODO(synk): for spatial sizes where H*W is not a multiple of 128 (e.g. 14x14)
    # output stores become masked vst.msk; a different legal factorization would help.
    x2 = x.reshape(rows, cols)

    # Per-row (row = n*C + c) affine parameters as f32 columns.
    scale_rows = jnp.broadcast_to(scale.reshape(1, C), (N, C)).reshape(rows, 1)
    bias_rows = jnp.broadcast_to(bias.reshape(1, C), (N, C)).reshape(rows, 1)
    scale_rows = scale_rows.astype(jnp.float32)
    bias_rows = bias_rows.astype(jnp.float32)

    row_blk = _choose_row_block(rows, cols, x.dtype)
    num_steps = pl.cdiv(rows, row_blk)          # ragged last block handled by Pallas
    rows_padded = num_steps * row_blk
    sub = _sublane_multiple(x.dtype)

    resident = rows_padded <= _RESIDENT_MAX_ROWS
    if resident:
        # Load once, keep resident across all grid steps (constant block index).
        # Pad so the in-kernel dynamic slice for the ragged last block stays in bounds.
        if rows_padded != rows:
            pad = ((0, rows_padded - rows), (0, 0))
            scale_rows = jnp.pad(scale_rows, pad)
            bias_rows = jnp.pad(bias_rows, pad)
        param_spec = pl.BlockSpec((rows_padded, 1), lambda i: (0, 0))
    else:
        # Very many rows: stream a (row_blk, 1) column per step instead.
        param_spec = pl.BlockSpec((row_blk, 1), lambda i: (i, 0))

    kernel = functools.partial(
        _scale_bias_kernel, row_block=row_blk, sublane=sub, resident=resident)

    out2 = pl.pallas_call(
        kernel,
        out_shape=jax.ShapeDtypeStruct((rows, cols), x.dtype),
        grid=(num_steps,),
        in_specs=[
            pl.BlockSpec((row_blk, cols), lambda i: (i, 0)),   # x tile (lane-dense)
            param_spec,                                        # per-row scale
            param_spec,                                        # per-row bias
        ],
        out_specs=pl.BlockSpec((row_blk, cols), lambda i: (i, 0)),
        input_output_aliases={0: 0},   # pure elementwise rewrite of x (XLA copies if
                                       # the operand is not donatable, so always safe)
        compiler_params=pltpu.CompilerParams(
            dimension_semantics=("parallel",),
            vmem_limit_bytes=_VMEM_LIMIT_BYTES,
        ),
    )(x2, scale_rows, bias_rows)

    return out2.reshape(N, C, H, W)


if __name__ == "__main__":
    N, C, H, W = 2, 4, 16, 16

    key = jax.random.PRNGKey(0)
    kx, ks, kb = jax.random.split(key, 3)
    x = jax.random.normal(kx, (N, C, H, W), dtype=jnp.float32)

    # Parameters as in CustomArithmeticBlock.__init__: ones / zeros.
    scale = jnp.ones((1, C, 1, 1), dtype=jnp.float32)
    bias = jnp.zeros((1, C, 1, 1), dtype=jnp.float32)

    ref = x * scale + bias
    out = jax.block_until_ready(custom_arithmetic_block(x, scale, bias))
    assert out.shape == (N, C, H, W)
    assert jnp.allclose(out, ref, atol=1e-6, rtol=1e-6)

    # Non-trivial (trained-like) parameters to exercise the per-channel broadcast path.
    scale2 = jax.random.normal(ks, (1, C, 1, 1), dtype=jnp.float32)
    bias2 = jax.random.normal(kb, (1, C, 1, 1), dtype=jnp.float32)
    ref2 = x * scale2 + bias2
    out2 = jax.block_until_ready(custom_arithmetic_block(x, scale2, bias2))
    assert jnp.allclose(out2, ref2, atol=1e-6, rtol=1e-6)

    print("KERNEL_OK")
</pallas_src>

<mosaic_0001>
module attributes {stable_mosaic.version = 11 : i64} {
  func.func @_scale_bias_kernel(%arg0: i32, %arg1: memref<8x256xf32, #tpu.memory_space<vmem>>, %arg2: memref<8x1xf32, #tpu.memory_space<vmem>>, %arg3: memref<8x1xf32, #tpu.memory_space<vmem>>, %arg4: memref<8x256xf32, #tpu.memory_space<vmem>>) attributes {dimension_semantics = [#tpu.dimension_semantics<parallel>], iteration_bounds = array<i64: 1>, scalar_prefetch = 0 : i64, scratch_operands = 0 : i64, tpu.core_type = #tpu.core_type<tc>, window_params = [{transform_indices = @transform_0, window_bounds = array<i64: 8, 256>}, {pipeline_mode = #tpu.pipeline_mode<synchronous>, transform_indices = @transform_1, window_bounds = array<i64: 8, 1>}, {pipeline_mode = #tpu.pipeline_mode<synchronous>, transform_indices = @transform_2, window_bounds = array<i64: 8, 1>}, {transform_indices = @transform_3, window_bounds = array<i64: 8, 256>}]} {
    %c0 = arith.constant 0 : index
    %c0_0 = arith.constant 0 : index
    %0 = vector.load %arg1[%c0, %c0_0] : memref<8x256xf32, #tpu.memory_space<vmem>>, vector<8x256xf32>
    %c8_i32 = arith.constant 8 : i32
    %1 = arith.muli %arg0, %c8_i32 : i32
    %2 = tpu.assume_multiple %1, 8 : i32
    %3 = arith.index_cast %2 : i32 to index
    %c0_1 = arith.constant 0 : index
    %4 = vector.load %arg2[%3, %c0_1] : memref<8x1xf32, #tpu.memory_space<vmem>>, vector<8x1xf32>
    %5 = arith.index_cast %2 : i32 to index
    %c0_2 = arith.constant 0 : index
    %6 = vector.load %arg3[%5, %c0_2] : memref<8x1xf32, #tpu.memory_space<vmem>>, vector<8x1xf32>
    %7 = vector.broadcast %4 : vector<8x1xf32> to vector<8x256xf32>
    %8 = arith.mulf %0, %7 : vector<8x256xf32>
    %9 = vector.broadcast %6 : vector<8x1xf32> to vector<8x256xf32>
    %10 = arith.addf %8, %9 : vector<8x256xf32>
    %c0_3 = arith.constant 0 : index
    %c0_4 = arith.constant 0 : index
    %11 = vector.load %arg4[%c0_3, %c0_4] : memref<8x256xf32, #tpu.memory_space<vmem>>, vector<8x256xf32>
    tpu.vector_store %arg4[%c0_3, %c0_4], %10 {strides = array<i32>} : memref<8x256xf32, #tpu.memory_space<vmem>>, vector<8x256xf32>,
    return
  }
  func.func @transform_0(%arg0: i32) -> (i32, i32) {
    %c0_i32 = arith.constant 0 : i32
    %c0_i32_0 = arith.constant 0 : i32
    return %arg0, %c0_i32 : i32, i32
  }
  func.func @transform_1(%arg0: i32) -> (i32, i32) {
    %c0_i32 = arith.constant 0 : i32
    %c0_i32_0 = arith.constant 0 : i32
    %c0_i32_1 = arith.constant 0 : i32
    return %c0_i32, %c0_i32_0 : i32, i32
  }
  func.func @transform_2(%arg0: i32) -> (i32, i32) {
    %c0_i32 = arith.constant 0 : i32
    %c0_i32_0 = arith.constant 0 : i32
    %c0_i32_1 = arith.constant 0 : i32
    return %c0_i32, %c0_i32_0 : i32, i32
  }
  func.func @transform_3(%arg0: i32) -> (i32, i32) {
    %c0_i32 = arith.constant 0 : i32
    %c0_i32_0 = arith.constant 0 : i32
    return %arg0, %c0_i32 : i32, i32
  }
}

</mosaic_0001>

<llo_original>
// kernel: custom_arithmetic_block.1
$region0: #{custom_arithmetic_block.1}
  #allocation0 [shape = 'u32[]', space=smem, size = 0x4, offset = 0x4, fixed_abs, tag = 'smem constant byte address 0x4 - core index']
  #allocation1 [shape = 'u32[72,128]{1,0:T(1,128)}', space=vmem, size = 0x9000, scoped, tag = 'internal scratch']
  %s0 = inlined_call_operand.vmem [shape: f32[8,256], index: 0, kind: input, shape index: {}, may-alias: {0,3}]
  %s1 = inlined_call_operand.vmem [shape: f32[8,1], index: 1, kind: input, shape index: {}]
  %s2 = inlined_call_operand.vmem [shape: f32[8,1], index: 2, kind: input, shape index: {}]
  %s3 = inlined_call_operand.vmem [shape: f32[8,256], index: 3, kind: output, shape index: {}, may-alias: {0,3}]
  %s4 = sld [smem:[#allocation0]]
  $region22: #{custom_arithmetic_block.1} parent=0
    _
  %s6 = ssub.s32 1, %s4
  %s7 = scalar_select 0, %s6, %s4
  // Predicated region
  $region2: #{custom_arithmetic_block.1} parent=0 // pred_check
    _
  $region3: #{custom_arithmetic_block.1} parent=0 // pred_check_branch
    %9 = sbr.rel (0) target = $region5
  $region4: #{custom_arithmetic_block.1} parent=0 // pred_region
    _
  $region5: #{custom_arithmetic_block.1} parent=0 // pred_fallthru
    _
  // Predicated region
  $region6: #{custom_arithmetic_block.1} parent=0 // pred_check
    _
  $region7: #{custom_arithmetic_block.1} parent=0 // pred_check_branch
    %11 = sbr.rel (0) target = $region9
  $region8: #{custom_arithmetic_block.1} parent=0 // pred_region
    _
  $region9: #{custom_arithmetic_block.1} parent=0 // pred_fallthru
    _
  // Predicated region
  $region10: #{custom_arithmetic_block.1} parent=0 // pred_check
    _
  $region11: #{custom_arithmetic_block.1} parent=0 // pred_check_branch
    %13 = sbr.rel (0) target = $region13
  $region12: #{custom_arithmetic_block.1} parent=0 // pred_region
    _
  $region13: #{custom_arithmetic_block.1} parent=0 // pred_fallthru
    _
  %v14 = vld [vmem:[%s0] sm:$0xff]
  %v15 = vld [vmem:[%s0 + $0x8] sm:$0xff]
  %s16 = smul.u32 0, 8
  %s17 = scalar_lea.vmem %s1, %s16
  %v18 = vld [vmem:[%s17] sm:$0xff]
  %s19 = scalar_lea.vmem %s2, %s16
  %v20 = vld [vmem:[%s19] sm:$0xff]
  %22 = vset.pattern.permute.xlu0 0
  %23 = vperm.xlu0 %22, %v18
  %v24 = vpop.permute.xlu0 %23
  %v26 = vmul.f32 %v14, %v24
  %v27 = vmul.f32 %v15, %v24
  %29 = vset.pattern.permute.xlu0 0
  %30 = vperm.xlu0 %29, %v20
  %v31 = vpop.permute.xlu0 %30
  %v33 = vadd.f32 %v26, %v31
  %v34 = vadd.f32 %v27, %v31
  %35 = vst [vmem:[%s3] sm:$0xff] %v33
  %36 = vst [vmem:[%s3 + $0x8] sm:$0xff] %v34
  // Predicated region
  $region14: #{custom_arithmetic_block.1} parent=0 // pred_check
    _
  $region15: #{custom_arithmetic_block.1} parent=0 // pred_check_branch
    %38 = sbr.rel (0) target = $region17
  $region16: #{custom_arithmetic_block.1} parent=0 // pred_region
    _
  $region17: #{custom_arithmetic_block.1} parent=0 // pred_fallthru
    _
  // Predicated region
  $region18: #{custom_arithmetic_block.1} parent=0 // pred_check
    _
  $region19: #{custom_arithmetic_block.1} parent=0 // pred_check_branch
    %40 = sbr.rel (0) target = $region21
  $region20: #{custom_arithmetic_block.1} parent=0 // pred_region
    _
  $region21: #{custom_arithmetic_block.1} parent=0 // pred_fallthru
    _

</llo_original>
